<compile_context>
chip_gen: v6e
topology: v6e:2x2x1
jax: 0.10.0
libtpu: 0.0.40
codegen_flags: <defaults>
</compile_context>

<pallas_src>
import jax
import jax.numpy as jnp
from jax.experimental import pallas as pl
from jax.experimental.pallas import tpu as pltpu

NB_INPUT = 15
HID = 5
HIDDEN = NB_INPUT * HID          # 75
NB_LAYER = 2                     # number of repeated hidden blocks
BN_EPS = 1e-5

PAD = 128                        # lane-dense padded feature width
N_LIN = NB_LAYER + 3             # 5 linear layers
N_BN = NB_LAYER + 2              # 4 batch-norm layers
VROWS = 16                       # >= N_LIN + 2*N_BN = 13, padded to sublane mult.

BIAS_ROW = 0                     # rows [0, N_LIN)           : linear biases
GAMMA_ROW = N_LIN                # rows [N_LIN, N_LIN+N_BN)  : BN gammas
BETA_ROW = N_LIN + N_BN          # rows [.., .. + N_BN)      : BN betas


# ---------------------------------------------------------------------------
# Kernel
# ---------------------------------------------------------------------------
def mynet_kernel(x_ref, w_ref, v_ref, out_ref):
    """Whole MLP forward in one grid-less invocation (everything in VMEM)."""

    def dense(h, li):
        w = w_ref[li]                                     # (128, 128) bf16
        b = v_ref[pl.ds(BIAS_ROW + li, 1), :]             # (1, 128)   f32
        return jnp.dot(h.astype(jnp.bfloat16), w,
                       preferred_element_type=jnp.float32) + b

    def bn_relu(h, bi):
        g = v_ref[pl.ds(GAMMA_ROW + bi, 1), :]            # (1, 128)
        be = v_ref[pl.ds(BETA_ROW + bi, 1), :]            # (1, 128)
        # One-pass batch stats: E[x^2] - mean^2 (biased variance).
        mu = jnp.mean(h, axis=0, keepdims=True)
        ex2 = jnp.mean(h * h, axis=0, keepdims=True)
        var = ex2 - mu * mu
        h_hat = (h - mu) * jax.lax.rsqrt(var + BN_EPS)
        return jnp.maximum(h_hat * g + be, 0.0)

    h = x_ref[...]                                        # (B, 128) f32

    h = bn_relu(dense(h, 0), 0)                           # 15 -> 75
    for l in range(NB_LAYER):                             # static unroll
        h = bn_relu(dense(h, 1 + l), 1 + l)               # 75 -> 75
    h = bn_relu(dense(h, 1 + NB_LAYER), 1 + NB_LAYER)     # 75 -> 15
    out_ref[...] = dense(h, 2 + NB_LAYER)                 # 15 -> 1 (lane 0)


# ---------------------------------------------------------------------------
# Wrapper
# ---------------------------------------------------------------------------
def mynet_forward(x, packed):
    """Run the whole MLP in one Pallas invocation. Returns (B, 1) f32."""
    B, f = x.shape
    assert f == NB_INPUT, f"expected {NB_INPUT} input features, got {f}"
    assert B % 8 == 0, "batch must be a multiple of 8 (TPU sublane count)"

    # Lane-dense padded input (pad 15 -> 128 with zeros).
    x_p = jnp.pad(x.astype(jnp.float32), ((0, 0), (0, PAD - NB_INPUT)))

    vmem_spec = pl.BlockSpec(memory_space=pltpu.MemorySpace.VMEM)
    out_p = pl.pallas_call(
        mynet_kernel,
        out_shape=jax.ShapeDtypeStruct((B, PAD), jnp.float32),
        in_specs=[vmem_spec, vmem_spec, vmem_spec],
        out_specs=vmem_spec,
    )(x_p, packed["w"], packed["v"])
    return out_p[:, :1]


# ---------------------------------------------------------------------------
# Parameters
# ---------------------------------------------------------------------------
def init_params(key):
    """PyTorch-style init: Linear ~ U(-1/sqrt(fan_in), +); BN weight≈1, bias≈0
    (deterministically perturbed so the affine path is exercised)."""
    ks = jax.random.split(key, 8)

    def linear(k, fan_in, fan_out):
        kw, kb = jax.random.split(k)
        bound = 1.0 / jnp.sqrt(float(fan_in))
        w = jax.random.uniform(kw, (fan_in, fan_out), jnp.float32, -bound, bound)
        b = jax.random.uniform(kb, (1, fan_out), jnp.float32, -bound, bound)
        return w, b

    w0, b0 = linear(ks[0], NB_INPUT, HIDDEN)
    wh_list, bh_list = [], []
    for l in range(NB_LAYER):
        w, b = linear(jax.random.fold_in(ks[1], l), HIDDEN, HIDDEN)
        wh_list.append(w)
        bh_list.append(b)
    wp, bp = linear(ks[2], HIDDEN, NB_INPUT)
    wo, bo = linear(ks[3], NB_INPUT, 1)

    g0 = 1.0 + 0.01 * jax.random.normal(ks[4], (1, HIDDEN), jnp.float32)
    be0 = 0.01 * jax.random.normal(ks[5], (1, HIDDEN), jnp.float32)
    gh = 1.0 + 0.01 * jax.random.normal(ks[6], (NB_LAYER, 1, HIDDEN), jnp.float32)
    beh = 0.01 * jax.random.normal(ks[7], (NB_LAYER, 1, HIDDEN), jnp.float32)
    gp = jnp.ones((1, NB_INPUT), jnp.float32)
    bep = jnp.zeros((1, NB_INPUT), jnp.float32)

    return dict(w0=w0, b0=b0, g0=g0, be0=be0,
                wh=jnp.stack(wh_list), bh=jnp.stack(bh_list), gh=gh, beh=beh,
                wp=wp, bp=bp, gp=gp, bep=bep,
                wo=wo, bo=bo)


def pack_params(p):
    """Pack all 15 parameter arrays into two lane-dense, 128-padded slabs."""
    w_slab = jnp.zeros((N_LIN, PAD, PAD), jnp.float32)
    v_slab = jnp.zeros((VROWS, PAD), jnp.float32)

    def put_w(slab, li, w):
        return slab.at[li, :w.shape[0], :w.shape[1]].set(w)

    def put_v(slab, row, v):
        v = v.reshape(-1)
        return slab.at[row, :v.shape[0]].set(v)

    # Linear weights / biases, in layer order: in, hidden*NB_LAYER, penult, out.
    w_slab = put_w(w_slab, 0, p["w0"])
    v_slab = put_v(v_slab, BIAS_ROW + 0, p["b0"])
    for l in range(NB_LAYER):
        w_slab = put_w(w_slab, 1 + l, p["wh"][l])
        v_slab = put_v(v_slab, BIAS_ROW + 1 + l, p["bh"][l])
    w_slab = put_w(w_slab, 1 + NB_LAYER, p["wp"])
    v_slab = put_v(v_slab, BIAS_ROW + 1 + NB_LAYER, p["bp"])
    w_slab = put_w(w_slab, 2 + NB_LAYER, p["wo"])
    v_slab = put_v(v_slab, BIAS_ROW + 2 + NB_LAYER, p["bo"])

    # BatchNorm gammas / betas, in BN order: bn0, bn hidden*NB_LAYER, bn penult.
    v_slab = put_v(v_slab, GAMMA_ROW + 0, p["g0"])
    v_slab = put_v(v_slab, BETA_ROW + 0, p["be0"])
    for l in range(NB_LAYER):
        v_slab = put_v(v_slab, GAMMA_ROW + 1 + l, p["gh"][l])
        v_slab = put_v(v_slab, BETA_ROW + 1 + l, p["beh"][l])
    v_slab = put_v(v_slab, GAMMA_ROW + 1 + NB_LAYER, p["gp"])
    v_slab = put_v(v_slab, BETA_ROW + 1 + NB_LAYER, p["bep"])

    return dict(w=w_slab.astype(jnp.bfloat16), v=v_slab)


# ---------------------------------------------------------------------------
# Pure-JAX reference (mirrors the kernel math: bf16 matmul inputs, f32 accum,
# one-pass variance) for a tight numerical sanity check.
# ---------------------------------------------------------------------------
def _bn_relu_ref(h, gamma, beta):
    mu = jnp.mean(h, axis=0, keepdims=True)
    ex2 = jnp.mean(h * h, axis=0, keepdims=True)
    var = ex2 - mu * mu
    h_hat = (h - mu) * jax.lax.rsqrt(var + BN_EPS)
    return jnp.maximum(h_hat * gamma + beta, 0.0)


def reference_forward(x, p):
    def mm(h, w):
        return jnp.dot(h.astype(jnp.bfloat16), w.astype(jnp.bfloat16),
                       preferred_element_type=jnp.float32)

    h = mm(x, p["w0"]) + p["b0"]
    h = _bn_relu_ref(h, p["g0"], p["be0"])
    for l in range(NB_LAYER):
        h = mm(h, p["wh"][l]) + p["bh"][l]
        h = _bn_relu_ref(h, p["gh"][l], p["beh"][l])
    h = mm(h, p["wp"]) + p["bp"]
    h = _bn_relu_ref(h, p["gp"], p["bep"])
    return mm(h, p["wo"]) + p["bo"]


if __name__ == "__main__":
    key = jax.random.PRNGKey(0)
    k_x, k_p = jax.random.split(key)

    B = 8                                           # small batch, multiple of 8
    x = jax.random.normal(k_x, (B, NB_INPUT), jnp.float32)
    params = init_params(k_p)
    packed = pack_params(params)

    out = mynet_forward(x, packed)
    out = jax.block_until_ready(out)

    ref = reference_forward(x, params)
    assert out.shape == (B, 1)
    assert jnp.allclose(out, ref, atol=1e-3, rtol=1e-3), "mismatch vs reference"

    print("KERNEL_OK")
</pallas_src>

<mosaic_0001>
module attributes {stable_mosaic.version = 11 : i64} {
  func.func @mynet_kernel(%arg0: memref<8x128xf32, #tpu.memory_space<vmem>>, %arg1: memref<5x128x128xbf16, #tpu.memory_space<vmem>>, %arg2: memref<16x128xf32, #tpu.memory_space<vmem>>, %arg3: memref<8x128xf32, #tpu.memory_space<vmem>>) attributes {dimension_semantics = [], scalar_prefetch = 0 : i64, scratch_operands = 0 : i64, tpu.core_type = #tpu.core_type<tc>} {
    %c0 = arith.constant 0 : index
    %c0_0 = arith.constant 0 : index
    %0 = vector.load %arg0[%c0, %c0_0] : memref<8x128xf32, #tpu.memory_space<vmem>>, vector<8x128xf32>
    %c0_1 = arith.constant 0 : index
    %c0_2 = arith.constant 0 : index
    %c0_3 = arith.constant 0 : index
    %1 = vector.load %arg1[%c0_1, %c0_2, %c0_3] : memref<5x128x128xbf16, #tpu.memory_space<vmem>>, vector<1x128x128xbf16>
    %2 = vector.shape_cast %1 : vector<1x128x128xbf16> to vector<128x128xbf16>
    %c0_4 = arith.constant 0 : index
    %c0_5 = arith.constant 0 : index
    %3 = vector.load %arg2[%c0_4, %c0_5] : memref<16x128xf32, #tpu.memory_space<vmem>>, vector<1x128xf32>
    %4 = arith.truncf %0 : vector<8x128xf32> to vector<8x128xbf16>
    %cst = arith.constant dense<0.000000e+00> : vector<8x128xf32>
    %5 = tpu.matmul %4, %2, %cst {dimension_numbers = #tpu.dot_dimension_numbers<[1], [0], [0], [1], [0, 0, 1, 1], [], []>} : vector<8x128xbf16>, vector<128x128xbf16>, vector<8x128xf32> -> vector<8x128xf32>
    %6 = vector.broadcast %3 : vector<1x128xf32> to vector<8x128xf32>
    %7 = arith.addf %5, %6 : vector<8x128xf32>
    %c5 = arith.constant 5 : index
    %c0_6 = arith.constant 0 : index
    %8 = vector.load %arg2[%c5, %c0_6] : memref<16x128xf32, #tpu.memory_space<vmem>>, vector<1x128xf32>
    %c9 = arith.constant 9 : index
    %c0_7 = arith.constant 0 : index
    %9 = vector.load %arg2[%c9, %c0_7] : memref<16x128xf32, #tpu.memory_space<vmem>>, vector<1x128xf32>
    %cst_8 = arith.constant dense<0.000000e+00> : vector<128xf32>
    %10 = vector.multi_reduction <add>, %7, %cst_8 [0] : vector<8x128xf32> to vector<128xf32>
    %11 = vector.shape_cast %10 : vector<128xf32> to vector<1x128xf32>
    %cst_9 = arith.constant 8.000000e+00 : f32
    %12 = vector.broadcast %cst_9 : f32 to vector<1x128xf32>
    %13 = arith.divf %11, %12 : vector<1x128xf32>
    %14 = arith.mulf %7, %7 : vector<8x128xf32>
    %cst_10 = arith.constant dense<0.000000e+00> : vector<128xf32>
    %15 = vector.multi_reduction <add>, %14, %cst_10 [0] : vector<8x128xf32> to vector<128xf32>
    %16 = vector.shape_cast %15 : vector<128xf32> to vector<1x128xf32>
    %cst_11 = arith.constant 8.000000e+00 : f32
    %17 = vector.broadcast %cst_11 : f32 to vector<1x128xf32>
    %18 = arith.divf %16, %17 : vector<1x128xf32>
    %19 = arith.mulf %13, %13 : vector<1x128xf32>
    %20 = arith.subf %18, %19 : vector<1x128xf32>
    %21 = vector.broadcast %13 : vector<1x128xf32> to vector<8x128xf32>
    %22 = arith.subf %7, %21 : vector<8x128xf32>
    %cst_12 = arith.constant 9.99999974E-6 : f32
    %23 = vector.broadcast %cst_12 : f32 to vector<1x128xf32>
    %24 = arith.addf %20, %23 : vector<1x128xf32>
    %25 = math.rsqrt %24 : vector<1x128xf32>
    %26 = vector.broadcast %25 : vector<1x128xf32> to vector<8x128xf32>
    %27 = arith.mulf %22, %26 : vector<8x128xf32>
    %28 = vector.broadcast %8 : vector<1x128xf32> to vector<8x128xf32>
    %29 = arith.mulf %27, %28 : vector<8x128xf32>
    %30 = vector.broadcast %9 : vector<1x128xf32> to vector<8x128xf32>
    %31 = arith.addf %29, %30 : vector<8x128xf32>
    %cst_13 = arith.constant 0.000000e+00 : f32
    %32 = vector.broadcast %cst_13 : f32 to vector<8x128xf32>
    %33 = arith.maximumf %31, %32 : vector<8x128xf32>
    %c1 = arith.constant 1 : index
    %c0_14 = arith.constant 0 : index
    %c0_15 = arith.constant 0 : index
    %34 = vector.load %arg1[%c1, %c0_14, %c0_15] : memref<5x128x128xbf16, #tpu.memory_space<vmem>>, vector<1x128x128xbf16>
    %35 = vector.shape_cast %34 : vector<1x128x128xbf16> to vector<128x128xbf16>
    %c1_16 = arith.constant 1 : index
    %c0_17 = arith.constant 0 : index
    %36 = vector.load %arg2[%c1_16, %c0_17] : memref<16x128xf32, #tpu.memory_space<vmem>>, vector<1x128xf32>
    %37 = arith.truncf %33 : vector<8x128xf32> to vector<8x128xbf16>
    %cst_18 = arith.constant dense<0.000000e+00> : vector<8x128xf32>
    %38 = tpu.matmul %37, %35, %cst_18 {dimension_numbers = #tpu.dot_dimension_numbers<[1], [0], [0], [1], [0, 0, 1, 1], [], []>} : vector<8x128xbf16>, vector<128x128xbf16>, vector<8x128xf32> -> vector<8x128xf32>
    %39 = vector.broadcast %36 : vector<1x128xf32> to vector<8x128xf32>
    %40 = arith.addf %38, %39 : vector<8x128xf32>
    %c6 = arith.constant 6 : index
    %c0_19 = arith.constant 0 : index
    %41 = vector.load %arg2[%c6, %c0_19] : memref<16x128xf32, #tpu.memory_space<vmem>>, vector<1x128xf32>
    %c10 = arith.constant 10 : index
    %c0_20 = arith.constant 0 : index
    %42 = vector.load %arg2[%c10, %c0_20] : memref<16x128xf32, #tpu.memory_space<vmem>>, vector<1x128xf32>
    %cst_21 = arith.constant dense<0.000000e+00> : vector<128xf32>
    %43 = vector.multi_reduction <add>, %40, %cst_21 [0] : vector<8x128xf32> to vector<128xf32>
    %44 = vector.shape_cast %43 : vector<128xf32> to vector<1x128xf32>
    %cst_22 = arith.constant 8.000000e+00 : f32
    %45 = vector.broadcast %cst_22 : f32 to vector<1x128xf32>
    %46 = arith.divf %44, %45 : vector<1x128xf32>
    %47 = arith.mulf %40, %40 : vector<8x128xf32>
    %cst_23 = arith.constant dense<0.000000e+00> : vector<128xf32>
    %48 = vector.multi_reduction <add>, %47, %cst_23 [0] : vector<8x128xf32> to vector<128xf32>
    %49 = vector.shape_cast %48 : vector<128xf32> to vector<1x128xf32>
    %cst_24 = arith.constant 8.000000e+00 : f32
    %50 = vector.broadcast %cst_24 : f32 to vector<1x128xf32>
    %51 = arith.divf %49, %50 : vector<1x128xf32>
    %52 = arith.mulf %46, %46 : vector<1x128xf32>
    %53 = arith.subf %51, %52 : vector<1x128xf32>
    %54 = vector.broadcast %46 : vector<1x128xf32> to vector<8x128xf32>
    %55 = arith.subf %40, %54 : vector<8x128xf32>
    %cst_25 = arith.constant 9.99999974E-6 : f32
    %56 = vector.broadcast %cst_25 : f32 to vector<1x128xf32>
    %57 = arith.addf %53, %56 : vector<1x128xf32>
    %58 = math.rsqrt %57 : vector<1x128xf32>
    %59 = vector.broadcast %58 : vector<1x128xf32> to vector<8x128xf32>
    %60 = arith.mulf %55, %59 : vector<8x128xf32>
    %61 = vector.broadcast %41 : vector<1x128xf32> to vector<8x128xf32>
    %62 = arith.mulf %60, %61 : vector<8x128xf32>
    %63 = vector.broadcast %42 : vector<1x128xf32> to vector<8x128xf32>
    %64 = arith.addf %62, %63 : vector<8x128xf32>
    %cst_26 = arith.constant 0.000000e+00 : f32
    %65 = vector.broadcast %cst_26 : f32 to vector<8x128xf32>
    %66 = arith.maximumf %64, %65 : vector<8x128xf32>
    %c2 = arith.constant 2 : index
    %c0_27 = arith.constant 0 : index
    %c0_28 = arith.constant 0 : index
    %67 = vector.load %arg1[%c2, %c0_27, %c0_28] : memref<5x128x128xbf16, #tpu.memory_space<vmem>>, vector<1x128x128xbf16>
    %68 = vector.shape_cast %67 : vector<1x128x128xbf16> to vector<128x128xbf16>
    %c2_29 = arith.constant 2 : index
    %c0_30 = arith.constant 0 : index
    %69 = vector.load %arg2[%c2_29, %c0_30] : memref<16x128xf32, #tpu.memory_space<vmem>>, vector<1x128xf32>
    %70 = arith.truncf %66 : vector<8x128xf32> to vector<8x128xbf16>
    %cst_31 = arith.constant dense<0.000000e+00> : vector<8x128xf32>
    %71 = tpu.matmul %70, %68, %cst_31 {dimension_numbers = #tpu.dot_dimension_numbers<[1], [0], [0], [1], [0, 0, 1, 1], [], []>} : vector<8x128xbf16>, vector<128x128xbf16>, vector<8x128xf32> -> vector<8x128xf32>
    %72 = vector.broadcast %69 : vector<1x128xf32> to vector<8x128xf32>
    %73 = arith.addf %71, %72 : vector<8x128xf32>
    %c7 = arith.constant 7 : index
    %c0_32 = arith.constant 0 : index
    %74 = vector.load %arg2[%c7, %c0_32] : memref<16x128xf32, #tpu.memory_space<vmem>>, vector<1x128xf32>
    %c11 = arith.constant 11 : index
    %c0_33 = arith.constant 0 : index
    %75 = vector.load %arg2[%c11, %c0_33] : memref<16x128xf32, #tpu.memory_space<vmem>>, vector<1x128xf32>
    %cst_34 = arith.constant dense<0.000000e+00> : vector<128xf32>
    %76 = vector.multi_reduction <add>, %73, %cst_34 [0] : vector<8x128xf32> to vector<128xf32>
    %77 = vector.shape_cast %76 : vector<128xf32> to vector<1x128xf32>
    %cst_35 = arith.constant 8.000000e+00 : f32
    %78 = vector.broadcast %cst_35 : f32 to vector<1x128xf32>
    %79 = arith.divf %77, %78 : vector<1x128xf32>
    %80 = arith.mulf %73, %73 : vector<8x128xf32>
    %cst_36 = arith.constant dense<0.000000e+00> : vector<128xf32>
    %81 = vector.multi_reduction <add>, %80, %cst_36 [0] : vector<8x128xf32> to vector<128xf32>
    %82 = vector.shape_cast %81 : vector<128xf32> to vector<1x128xf32>
    %cst_37 = arith.constant 8.000000e+00 : f32
    %83 = vector.broadcast %cst_37 : f32 to vector<1x128xf32>
    %84 = arith.divf %82, %83 : vector<1x128xf32>
    %85 = arith.mulf %79, %79 : vector<1x128xf32>
    %86 = arith.subf %84, %85 : vector<1x128xf32>
    %87 = vector.broadcast %79 : vector<1x128xf32> to vector<8x128xf32>
    %88 = arith.subf %73, %87 : vector<8x128xf32>
    %cst_38 = arith.constant 9.99999974E-6 : f32
    %89 = vector.broadcast %cst_38 : f32 to vector<1x128xf32>
    %90 = arith.addf %86, %89 : vector<1x128xf32>
    %91 = math.rsqrt %90 : vector<1x128xf32>
    %92 = vector.broadcast %91 : vector<1x128xf32> to vector<8x128xf32>
    %93 = arith.mulf %88, %92 : vector<8x128xf32>
    %94 = vector.broadcast %74 : vector<1x128xf32> to vector<8x128xf32>
    %95 = arith.mulf %93, %94 : vector<8x128xf32>
    %96 = vector.broadcast %75 : vector<1x128xf32> to vector<8x128xf32>
    %97 = arith.addf %95, %96 : vector<8x128xf32>
    %cst_39 = arith.constant 0.000000e+00 : f32
    %98 = vector.broadcast %cst_39 : f32 to vector<8x128xf32>
    %99 = arith.maximumf %97, %98 : vector<8x128xf32>
    %c3 = arith.constant 3 : index
    %c0_40 = arith.constant 0 : index
    %c0_41 = arith.constant 0 : index
    %100 = vector.load %arg1[%c3, %c0_40, %c0_41] : memref<5x128x128xbf16, #tpu.memory_space<vmem>>, vector<1x128x128xbf16>
    %101 = vector.shape_cast %100 : vector<1x128x128xbf16> to vector<128x128xbf16>
    %c3_42 = arith.constant 3 : index
    %c0_43 = arith.constant 0 : index
    %102 = vector.load %arg2[%c3_42, %c0_43] : memref<16x128xf32, #tpu.memory_space<vmem>>, vector<1x128xf32>
    %103 = arith.truncf %99 : vector<8x128xf32> to vector<8x128xbf16>
    %cst_44 = arith.constant dense<0.000000e+00> : vector<8x128xf32>
    %104 = tpu.matmul %103, %101, %cst_44 {dimension_numbers = #tpu.dot_dimension_numbers<[1], [0], [0], [1], [0, 0, 1, 1], [], []>} : vector<8x128xbf16>, vector<128x128xbf16>, vector<8x128xf32> -> vector<8x128xf32>
    %105 = vector.broadcast %102 : vector<1x128xf32> to vector<8x128xf32>
    %106 = arith.addf %104, %105 : vector<8x128xf32>
    %c8 = arith.constant 8 : index
    %c0_45 = arith.constant 0 : index
    %107 = vector.load %arg2[%c8, %c0_45] : memref<16x128xf32, #tpu.memory_space<vmem>>, vector<1x128xf32>
    %c12 = arith.constant 12 : index
    %c0_46 = arith.constant 0 : index
    %108 = vector.load %arg2[%c12, %c0_46] : memref<16x128xf32, #tpu.memory_space<vmem>>, vector<1x128xf32>
    %cst_47 = arith.constant dense<0.000000e+00> : vector<128xf32>
    %109 = vector.multi_reduction <add>, %106, %cst_47 [0] : vector<8x128xf32> to vector<128xf32>
    %110 = vector.shape_cast %109 : vector<128xf32> to vector<1x128xf32>
    %cst_48 = arith.constant 8.000000e+00 : f32
    %111 = vector.broadcast %cst_48 : f32 to vector<1x128xf32>
    %112 = arith.divf %110, %111 : vector<1x128xf32>
    %113 = arith.mulf %106, %106 : vector<8x128xf32>
    %cst_49 = arith.constant dense<0.000000e+00> : vector<128xf32>
    %114 = vector.multi_reduction <add>, %113, %cst_49 [0] : vector<8x128xf32> to vector<128xf32>
    %115 = vector.shape_cast %114 : vector<128xf32> to vector<1x128xf32>
    %cst_50 = arith.constant 8.000000e+00 : f32
    %116 = vector.broadcast %cst_50 : f32 to vector<1x128xf32>
    %117 = arith.divf %115, %116 : vector<1x128xf32>
    %118 = arith.mulf %112, %112 : vector<1x128xf32>
    %119 = arith.subf %117, %118 : vector<1x128xf32>
    %120 = vector.broadcast %112 : vector<1x128xf32> to vector<8x128xf32>
    %121 = arith.subf %106, %120 : vector<8x128xf32>
    %cst_51 = arith.constant 9.99999974E-6 : f32
    %122 = vector.broadcast %cst_51 : f32 to vector<1x128xf32>
    %123 = arith.addf %119, %122 : vector<1x128xf32>
    %124 = math.rsqrt %123 : vector<1x128xf32>
    %125 = vector.broadcast %124 : vector<1x128xf32> to vector<8x128xf32>
    %126 = arith.mulf %121, %125 : vector<8x128xf32>
    %127 = vector.broadcast %107 : vector<1x128xf32> to vector<8x128xf32>
    %128 = arith.mulf %126, %127 : vector<8x128xf32>
    %129 = vector.broadcast %108 : vector<1x128xf32> to vector<8x128xf32>
    %130 = arith.addf %128, %129 : vector<8x128xf32>
    %cst_52 = arith.constant 0.000000e+00 : f32
    %131 = vector.broadcast %cst_52 : f32 to vector<8x128xf32>
    %132 = arith.maximumf %130, %131 : vector<8x128xf32>
    %c4 = arith.constant 4 : index
    %c0_53 = arith.constant 0 : index
    %c0_54 = arith.constant 0 : index
    %133 = vector.load %arg1[%c4, %c0_53, %c0_54] : memref<5x128x128xbf16, #tpu.memory_space<vmem>>, vector<1x128x128xbf16>
    %134 = vector.shape_cast %133 : vector<1x128x128xbf16> to vector<128x128xbf16>
    %c4_55 = arith.constant 4 : index
    %c0_56 = arith.constant 0 : index
    %135 = vector.load %arg2[%c4_55, %c0_56] : memref<16x128xf32, #tpu.memory_space<vmem>>, vector<1x128xf32>
    %136 = arith.truncf %132 : vector<8x128xf32> to vector<8x128xbf16>
    %cst_57 = arith.constant dense<0.000000e+00> : vector<8x128xf32>
    %137 = tpu.matmul %136, %134, %cst_57 {dimension_numbers = #tpu.dot_dimension_numbers<[1], [0], [0], [1], [0, 0, 1, 1], [], []>} : vector<8x128xbf16>, vector<128x128xbf16>, vector<8x128xf32> -> vector<8x128xf32>
    %138 = vector.broadcast %135 : vector<1x128xf32> to vector<8x128xf32>
    %139 = arith.addf %137, %138 : vector<8x128xf32>
    %c0_58 = arith.constant 0 : index
    %c0_59 = arith.constant 0 : index
    %140 = vector.load %arg3[%c0_58, %c0_59] : memref<8x128xf32, #tpu.memory_space<vmem>>, vector<8x128xf32>
    tpu.vector_store %arg3[%c0_58, %c0_59], %139 {strides = array<i32>} : memref<8x128xf32, #tpu.memory_space<vmem>>, vector<8x128xf32>,
    return
  }
}

</mosaic_0001>

<llo_original>
// kernel: tpu_custom_call.1
$region0: #{tpu_custom_call.1}
  #allocation0 [shape = 'u32[]', space=smem, size = 0x4, offset = 0x4, fixed_abs, tag = 'smem constant byte address 0x4 - core index']
  #allocation1 [shape = 'u32[144,128]{1,0:T(1,128)}', space=vmem, size = 0x12000, scoped, tag = 'internal scratch']
  %s0 = inlined_call_operand.hbm [shape: f32[8,128], index: 0, kind: input, shape index: {}]
  %s1 = inlined_call_operand.hbm [shape: bf16[5,128,128], index: 1, kind: input, shape index: {}]
  %s2 = inlined_call_operand.hbm [shape: f32[16,128], index: 2, kind: input, shape index: {}]
  %s3 = inlined_call_operand.hbm [shape: f32[8,128], index: 3, kind: output, shape index: {}]
  %s4 = sld [smem:[#allocation0]]
  $region34: #{tpu_custom_call.1} parent=0
    _
  %s6 = ssub.s32 1, %s4
  %s7 = scalar_select 0, %s6, %s4
  $region1: #{tpu_custom_call.1} parent=0
    #allocation2 [shape = 'u8[4096]{0}', space=vmem, size = 0x1000, scoped, tag = 'input window, operand 0, single buffered']
    #allocation3 [shape = 's32[1]{0}', space=sflag, size = 0x4, scoped, tag = 'scoped memory for tpu_custom_call.1']
    #allocation4 [shape = 's32[1]{0}', space=sflag, size = 0x4, scoped, tag = 'scoped memory for tpu_custom_call.1']
    #allocation5 [shape = 'u8[163840]{0}', space=vmem, size = 0x28000, scoped, tag = 'input window, operand 1, single buffered']
    #allocation6 [shape = 's32[1]{0}', space=sflag, size = 0x4, scoped, tag = 'scoped memory for tpu_custom_call.1']
    #allocation7 [shape = 'u8[8192]{0}', space=vmem, size = 0x2000, scoped, tag = 'input window, operand 2, single buffered']
    #allocation8 [shape = 'u8[4096]{0}', space=vmem, size = 0x1000, scoped, tag = 'output window, operand 0, single buffered']
    %8 = vsyncpa [#allocation3], 0
    %9 = vsyncpa [#allocation6], 0
    %10 = vsyncpa [#allocation4], 0
    // Predicated region
    $region2: #{tpu_custom_call.1} parent=1 // pred_check
      _
    $region3: #{tpu_custom_call.1} parent=1 // pred_check_branch
      %12 = sbr.rel (0) target = $region5
    $region4: #{tpu_custom_call.1} parent=1 // pred_region
      %s14 = ssub.s32 128, 128
      %15 = vsyncadd [#allocation3], %s14
      %s17 = sshll.u32 [#allocation2], 4
      %s18 = int_to_ptr.vmem [resolvable:$true] %s17
      %20 = dma.hbm_to_vmem [thread:$0]  %s0, 128, %s18, [#allocation3]
    $region5: #{tpu_custom_call.1} parent=1 // pred_fallthru
      _
    // Predicated region
    $region6: #{tpu_custom_call.1} parent=1 // pred_check
      _
    $region7: #{tpu_custom_call.1} parent=1 // pred_check_branch
      %22 = sbr.rel (0) target = $region9
    $region8: #{tpu_custom_call.1} parent=1 // pred_region
      %s24 = ssub.s32 5120, 5120
      %25 = vsyncadd [#allocation6], %s24
      %s26 = sshll.u32 [#allocation5], 4
      %s27 = int_to_ptr.vmem [resolvable:$true] %s26
      %32 = dma.hbm_to_vmem [thread:$0]  %s1, 5120, %s27, [#allocation6], 64, 64, 4
    $region9: #{tpu_custom_call.1} parent=1 // pred_fallthru
      _
    // Predicated region
    $region10: #{tpu_custom_call.1} parent=1 // pred_check
      _
    $region11: #{tpu_custom_call.1} parent=1 // pred_check_branch
      %34 = sbr.rel (0) target = $region13
    $region12: #{tpu_custom_call.1} parent=1 // pred_region
      %s36 = ssub.s32 256, 256
      %37 = vsyncadd [#allocation6], %s36
      %s38 = sshll.u32 [#allocation7], 4
      %s39 = int_to_ptr.vmem [resolvable:$true] %s38
      %44 = dma.hbm_to_vmem [thread:$0]  %s2, 256, %s39, [#allocation6], 128, 128, 8
    $region13: #{tpu_custom_call.1} parent=1 // pred_fallthru
      _
    // Predicated region
    $region14: #{tpu_custom_call.1} parent=1 // pred_check
      _
    $region15: #{tpu_custom_call.1} parent=1 // pred_check_branch
      %46 = sbr.rel (0) target = $region17
    $region16: #{tpu_custom_call.1} parent=1 // pred_region
      %47 = dma.done [#allocation3], 128
    $region17: #{tpu_custom_call.1} parent=1 // pred_fallthru
      _
    // Predicated region
    $region18: #{tpu_custom_call.1} parent=1 // pred_check
      _
    $region19: #{tpu_custom_call.1} parent=1 // pred_check_branch
      %49 = sbr.rel (0) target = $region21
    $region20: #{tpu_custom_call.1} parent=1 // pred_region
      %50 = dma.done [#allocation6], 5120
    $region21: #{tpu_custom_call.1} parent=1 // pred_fallthru
      _
    // Predicated region
    $region22: #{tpu_custom_call.1} parent=1 // pred_check
      _
    $region23: #{tpu_custom_call.1} parent=1 // pred_check_branch
      %52 = sbr.rel (0) target = $region25
    $region24: #{tpu_custom_call.1} parent=1 // pred_region
      %53 = dma.done [#allocation6], 256
    $region25: #{tpu_custom_call.1} parent=1 // pred_fallthru
      _
    %v55 = vld [vmem:[#allocation2] sm:$0xff]
    %v56 = vld [vmem:[#allocation5] sm:$0xf]
    %v57 = vld [vmem:[#allocation5 + $0x4] sm:$0xf]
    %v58 = vld [vmem:[#allocation5 + $0x8] sm:$0xf]
    %v59 = vld [vmem:[#allocation5 + $0xc] sm:$0xf]
    %v60 = vld [vmem:[#allocation5 + $0x10] sm:$0xf]
    %v61 = vld [vmem:[#allocation5 + $0x14] sm:$0xf]
    %v62 = vld [vmem:[#allocation5 + $0x18] sm:$0xf]
    %v63 = vld [vmem:[#allocation5 + $0x1c] sm:$0xf]
    %v64 = vld [vmem:[#allocation5 + $0x20] sm:$0xf]
    %v65 = vld [vmem:[#allocation5 + $0x24] sm:$0xf]
    %v66 = vld [vmem:[#allocation5 + $0x28] sm:$0xf]
    %v67 = vld [vmem:[#allocation5 + $0x2c] sm:$0xf]
    %v68 = vld [vmem:[#allocation5 + $0x30] sm:$0xf]
    %v69 = vld [vmem:[#allocation5 + $0x34] sm:$0xf]
    %v70 = vld [vmem:[#allocation5 + $0x38] sm:$0xf]
    %v71 = vld [vmem:[#allocation5 + $0x3c] sm:$0xf]
    %v72 = vld [vmem:[#allocation7] sm:$0x1]
    %v73 = vpack.c.bf16 %v55, %v55
    %v74 = vlaneseq
    %v75 = vshrl.u32 %v74, 7
    %v76 = vsub.s32 0, %v75
    %v77 = vrot.slane %v72, %v76
    %v94 = vunpack.c.l.b16 %v56
    %v95 = vunpack.c.l.b16 %v57
    %v96 = vunpack.c.l.b16 %v58
    %v97 = vunpack.c.l.b16 %v59
    %v98 = vunpack.c.l.b16 %v60
    %v99 = vunpack.c.l.b16 %v61
    %v100 = vunpack.c.l.b16 %v62
    %v101 = vunpack.c.l.b16 %v63
    %v102 = vunpack.c.l.b16 %v64
    %v103 = vunpack.c.l.b16 %v65
    %v104 = vunpack.c.l.b16 %v66
    %v105 = vunpack.c.l.b16 %v67
    %v106 = vunpack.c.l.b16 %v68
    %v107 = vunpack.c.l.b16 %v69
    %v108 = vunpack.c.l.b16 %v70
    %v109 = vunpack.c.l.b16 %v71
    %v110 = vpack.c.b16 %v95, %v94
    %v111 = vpack.c.b16 %v97, %v96
    %v112 = vpack.c.b16 %v99, %v98
    %v113 = vpack.c.b16 %v101, %v100
    %v114 = vpack.c.b16 %v103, %v102
    %v115 = vpack.c.b16 %v105, %v104
    %v116 = vpack.c.b16 %v107, %v106
    %v117 = vpack.c.b16 %v109, %v108
    %126 = vmatprep.subr.bf16.mxu0 0
    %127 = vmatpush1.bf16.msra.mxu0 %v117
    %128 = vmatprep.subr.bf16.mxu0 0
    %129 = vmatpush1.bf16.msra.mxu0 %v116
    %130 = vmatprep.subr.bf16.mxu0 0
    %131 = vmatpush1.bf16.msra.mxu0 %v115
    %132 = vmatprep.subr.bf16.mxu0 0
    %133 = vmatpush1.bf16.msra.mxu0 %v114
    %134 = vmatprep.subr.bf16.mxu0 0
    %135 = vmatpush1.bf16.msra.mxu0 %v113
    %136 = vmatprep.subr.bf16.mxu0 0
    %137 = vmatpush1.bf16.msra.mxu0 %v112
    %138 = vmatprep.subr.bf16.mxu0 0
    %139 = vmatpush1.bf16.msra.mxu0 %v111
    %140 = vmatprep.subr.bf16.mxu0 0
    %141 = vmatpush1.bf16.msra.mxu0 %v110
    %142 = vmatprep.subr.bf16.mxu0 0
    %143 = vmatpush2.bf16.msra.mxu0 0
    %144 = vmatprep.subr.bf16.mxu0 0
    %145 = vmatpush2.bf16.msra.mxu0 0
    %146 = vmatprep.subr.bf16.mxu0 0
    %147 = vmatpush2.bf16.msra.mxu0 0
    %148 = vmatprep.subr.bf16.mxu0 0
    %149 = vmatpush2.bf16.msra.mxu0 0
    %150 = vmatprep.subr.bf16.mxu0 0
    %151 = vmatpush2.bf16.msra.mxu0 0
    %152 = vmatprep.subr.bf16.mxu0 0
    %153 = vmatpush2.bf16.msra.mxu0 0
    %154 = vmatprep.subr.bf16.mxu0 0
    %155 = vmatpush2.bf16.msra.mxu0 0
    %156 = vmatprep.subr.bf16.mxu0 0
    %157 = vmatpush2.bf16.msra.mxu0 0
    %158 = vmatprep.mubr.bf16.mxu0 0
    %159 = vmatmul.mubr.bf16.gmra.mxu0 %v73
    %v160 = vpop.f32.mrf.mxu0
    %v161 = vadd.f32 %v77, %v160
    %v162 = vpop.f32.mrf.mxu0
    %v163 = vpop.f32.mrf.mxu0
    %v164 = vpop.f32.mrf.mxu0
    %165 = vdwg.mxu0
    %v166 = vld [vmem:[#allocation7 + $0x5] sm:$0x1]
    %v167 = vld [vmem:[#allocation7 + $0x9] sm:$0x1]
    %v168 = vrot.slane %v161, 4
    %v169 = vadd.f32 %v161, %v168
    %v170 = vrot.slane %v169, 2
    %v171 = vadd.f32 %v169, %v170
    %v172 = vrot.slane %v171, 1
    %v173 = vadd.f32 %v171, %v172
    %v174 = vrcp.pop 8.0
    %v175 = vmul.f32 %v173, %v174
    %v176 = vmul.f32 %v161, %v161
    %v177 = vrot.slane %v176, 4
    %v178 = vadd.f32 %v176, %v177
    %v179 = vrot.slane %v178, 2
    %v180 = vadd.f32 %v178, %v179
    %v181 = vrot.slane %v180, 1
    %v182 = vadd.f32 %v180, %v181
    %v183 = vmul.f32 %v182, %v174
    %v184 = vmul.f32 %v175, %v175
    %v185 = vsub.f32 %v183, %v184
    %v186 = vsub.f32 %v161, %v175
    %v187 = vadd.f32 %v185, 1e-05
    %v188 = vrsqrt.pop %v187
    %v189 = vmul.f32 %v186, %v188
    %v190 = vlaneseq
    %v191 = vshrl.u32 %v190, 7
    %v192 = vsub.s32 0, %v191
    %v193 = vrot.slane %v166, %v192
    %v194 = vmul.f32 %v189, %v193
    %v195 = vlaneseq
    %v196 = vshrl.u32 %v195, 7
    %v197 = vsub.s32 0, %v196
    %v198 = vrot.slane %v167, %v197
    %v199 = vadd.f32 %v194, %v198
    %v200 = vmax.f32 %v199, 0.0
    %s201 = scalar_lea.vmem [#allocation5], 64
    %v202 = vld [vmem:[%s201] sm:$0xf]
    %v203 = vld [vmem:[%s201 + $0x4] sm:$0xf]
    %v204 = vld [vmem:[%s201 + $0x8] sm:$0xf]
    %v205 = vld [vmem:[%s201 + $0xc] sm:$0xf]
    %v206 = vld [vmem:[%s201 + $0x10] sm:$0xf]
    %v207 = vld [vmem:[%s201 + $0x14] sm:$0xf]
    %v208 = vld [vmem:[%s201 + $0x18] sm:$0xf]
    %v209 = vld [vmem:[%s201 + $0x1c] sm:$0xf]
    %v210 = vld [vmem:[%s201 + $0x20] sm:$0xf]
    %v211 = vld [vmem:[%s201 + $0x24] sm:$0xf]
    %v212 = vld [vmem:[%s201 + $0x28] sm:$0xf]
    %v213 = vld [vmem:[%s201 + $0x2c] sm:$0xf]
    %v214 = vld [vmem:[%s201 + $0x30] sm:$0xf]
    %v215 = vld [vmem:[%s201 + $0x34] sm:$0xf]
    %v216 = vld [vmem:[%s201 + $0x38] sm:$0xf]
    %v217 = vld [vmem:[%s201 + $0x3c] sm:$0xf]
    %v218 = vld [vmem:[#allocation7 + $0x1] sm:$0x1]
    %v219 = vpack.c.bf16 %v200, %v200
    %v220 = vlaneseq
    %v221 = vshrl.u32 %v220, 7
    %v222 = vsub.s32 0, %v221
    %v223 = vrot.slane %v218, %v222
    %v240 = vunpack.c.l.b16 %v202
    %v241 = vunpack.c.l.b16 %v203
    %v242 = vunpack.c.l.b16 %v204
    %v243 = vunpack.c.l.b16 %v205
    %v244 = vunpack.c.l.b16 %v206
    %v245 = vunpack.c.l.b16 %v207
    %v246 = vunpack.c.l.b16 %v208
    %v247 = vunpack.c.l.b16 %v209
    %v248 = vunpack.c.l.b16 %v210
    %v249 = vunpack.c.l.b16 %v211
    %v250 = vunpack.c.l.b16 %v212
    %v251 = vunpack.c.l.b16 %v213
    %v252 = vunpack.c.l.b16 %v214
    %v253 = vunpack.c.l.b16 %v215
    %v254 = vunpack.c.l.b16 %v216
    %v255 = vunpack.c.l.b16 %v217
    %v256 = vpack.c.b16 %v241, %v240
    %v257 = vpack.c.b16 %v243, %v242
    %v258 = vpack.c.b16 %v245, %v244
    %v259 = vpack.c.b16 %v247, %v246
    %v260 = vpack.c.b16 %v249, %v248
    %v261 = vpack.c.b16 %v251, %v250
    %v262 = vpack.c.b16 %v253, %v252
    %v263 = vpack.c.b16 %v255, %v254
    %272 = vmatprep.subr.bf16.mxu0 0
    %273 = vmatpush1.bf16.msra.mxu0 %v263
    %274 = vmatprep.subr.bf16.mxu0 0
    %275 = vmatpush1.bf16.msra.mxu0 %v262
    %276 = vmatprep.subr.bf16.mxu0 0
    %277 = vmatpush1.bf16.msra.mxu0 %v261
    %278 = vmatprep.subr.bf16.mxu0 0
    %279 = vmatpush1.bf16.msra.mxu0 %v260
    %280 = vmatprep.subr.bf16.mxu0 0
    %281 = vmatpush1.bf16.msra.mxu0 %v259
    %282 = vmatprep.subr.bf16.mxu0 0
    %283 = vmatpush1.bf16.msra.mxu0 %v258
    %284 = vmatprep.subr.bf16.mxu0 0
    %285 = vmatpush1.bf16.msra.mxu0 %v257
    %286 = vmatprep.subr.bf16.mxu0 0
    %287 = vmatpush1.bf16.msra.mxu0 %v256
    %288 = vmatprep.subr.bf16.mxu0 0
    %289 = vmatpush2.bf16.msra.mxu0 0
    %290 = vmatprep.subr.bf16.mxu0 0
    %291 = vmatpush2.bf16.msra.mxu0 0
    %292 = vmatprep.subr.bf16.mxu0 0
    %293 = vmatpush2.bf16.msra.mxu0 0
    %294 = vmatprep.subr.bf16.mxu0 0
    %295 = vmatpush2.bf16.msra.mxu0 0
    %296 = vmatprep.subr.bf16.mxu0 0
    %297 = vmatpush2.bf16.msra.mxu0 0
    %298 = vmatprep.subr.bf16.mxu0 0
    %299 = vmatpush2.bf16.msra.mxu0 0
    %300 = vmatprep.subr.bf16.mxu0 0
    %301 = vmatpush2.bf16.msra.mxu0 0
    %302 = vmatprep.subr.bf16.mxu0 0
    %303 = vmatpush2.bf16.msra.mxu0 0
    %304 = vmatprep.mubr.bf16.mxu0 0
    %305 = vmatmul.mubr.bf16.gmra.mxu0 %v219
    %v306 = vpop.f32.mrf.mxu0
    %v307 = vadd.f32 %v223, %v306
    %v308 = vpop.f32.mrf.mxu0
    %v309 = vpop.f32.mrf.mxu0
    %v310 = vpop.f32.mrf.mxu0
    %311 = vdwg.mxu0
    %v312 = vld [vmem:[#allocation7 + $0x6] sm:$0x1]
    %v313 = vld [vmem:[#allocation7 + $0xa] sm:$0x1]
    %v314 = vrot.slane %v307, 4
    %v315 = vadd.f32 %v307, %v314
    %v316 = vrot.slane %v315, 2
    %v317 = vadd.f32 %v315, %v316
    %v318 = vrot.slane %v317, 1
    %v319 = vadd.f32 %v317, %v318
    %v320 = vmul.f32 %v319, %v174
    %v321 = vmul.f32 %v307, %v307
    %v322 = vrot.slane %v321, 4
    %v323 = vadd.f32 %v321, %v322
    %v324 = vrot.slane %v323, 2
    %v325 = vadd.f32 %v323, %v324
    %v326 = vrot.slane %v325, 1
    %v327 = vadd.f32 %v325, %v326
    %v328 = vmul.f32 %v327, %v174
    %v329 = vmul.f32 %v320, %v320
    %v330 = vsub.f32 %v328, %v329
    %v331 = vsub.f32 %v307, %v320
    %v332 = vadd.f32 %v330, 1e-05
    %v333 = vrsqrt.pop %v332
    %v334 = vmul.f32 %v331, %v333
    %v335 = vlaneseq
    %v336 = vshrl.u32 %v335, 7
    %v337 = vsub.s32 0, %v336
    %v338 = vrot.slane %v312, %v337
    %v339 = vmul.f32 %v334, %v338
    %v340 = vlaneseq
    %v341 = vshrl.u32 %v340, 7
    %v342 = vsub.s32 0, %v341
    %v343 = vrot.slane %v313, %v342
    %v344 = vadd.f32 %v339, %v343
    %v345 = vmax.f32 %v344, 0.0
    %s346 = scalar_lea.vmem [#allocation5], 128
    %v347 = vld [vmem:[%s346] sm:$0xf]
    %v348 = vld [vmem:[%s346 + $0x4] sm:$0xf]
    %v349 = vld [vmem:[%s346 + $0x8] sm:$0xf]
    %v350 = vld [vmem:[%s346 + $0xc] sm:$0xf]
    %v351 = vld [vmem:[%s346 + $0x10] sm:$0xf]
    %v352 = vld [vmem:[%s346 + $0x14] sm:$0xf]
    %v353 = vld [vmem:[%s346 + $0x18] sm:$0xf]
    %v354 = vld [vmem:[%s346 + $0x1c] sm:$0xf]
    %v355 = vld [vmem:[%s346 + $0x20] sm:$0xf]
    %v356 = vld [vmem:[%s346 + $0x24] sm:$0xf]
    %v357 = vld [vmem:[%s346 + $0x28] sm:$0xf]
    %v358 = vld [vmem:[%s346 + $0x2c] sm:$0xf]
    %v359 = vld [vmem:[%s346 + $0x30] sm:$0xf]
    %v360 = vld [vmem:[%s346 + $0x34] sm:$0xf]
    %v361 = vld [vmem:[%s346 + $0x38] sm:$0xf]
    %v362 = vld [vmem:[%s346 + $0x3c] sm:$0xf]
    %v363 = vld [vmem:[#allocation7 + $0x2] sm:$0x1]
    %v364 = vpack.c.bf16 %v345, %v345
    %v365 = vlaneseq
    %v366 = vshrl.u32 %v365, 7
    %v367 = vsub.s32 0, %v366
    %v368 = vrot.slane %v363, %v367
    %v385 = vunpack.c.l.b16 %v347
    %v386 = vunpack.c.l.b16 %v348
    %v387 = vunpack.c.l.b16 %v349
    %v388 = vunpack.c.l.b16 %v350
    %v389 = vunpack.c.l.b16 %v351
    %v390 = vunpack.c.l.b16 %v352
    %v391 = vunpack.c.l.b16 %v353
    %v392 = vunpack.c.l.b16 %v354
    %v393 = vunpack.c.l.b16 %v355
    %v394 = vunpack.c.l.b16 %v356
    %v395 = vunpack.c.l.b16 %v357
    %v396 = vunpack.c.l.b16 %v358
    %v397 = vunpack.c.l.b16 %v359
    %v398 = vunpack.c.l.b16 %v360
    %v399 = vunpack.c.l.b16 %v361
    %v400 = vunpack.c.l.b16 %v362
    %v401 = vpack.c.b16 %v386, %v385
    %v402 = vpack.c.b16 %v388, %v387
    %v403 = vpack.c.b16 %v390, %v389
    %v404 = vpack.c.b16 %v392, %v391
    %v405 = vpack.c.b16 %v394, %v393
    %v406 = vpack.c.b16 %v396, %v395
    %v407 = vpack.c.b16 %v398, %v397
    %v408 = vpack.c.b16 %v400, %v399
    %417 = vmatprep.subr.bf16.mxu0 0
    %418 = vmatpush1.bf16.msra.mxu0 %v408
    %419 = vmatprep.subr.bf16.mxu0 0
    %420 = vmatpush1.bf16.msra.mxu0 %v407
    %421 = vmatprep.subr.bf16.mxu0 0
    %422 = vmatpush1.bf16.msra.mxu0 %v406
    %423 = vmatprep.subr.bf16.mxu0 0
    %424 = vmatpush1.bf16.msra.mxu0 %v405
    %425 = vmatprep.subr.bf16.mxu0 0
    %426 = vmatpush1.bf16.msra.mxu0 %v404
    %427 = vmatprep.subr.bf16.mxu0 0
    %428 = vmatpush1.bf16.msra.mxu0 %v403
    %429 = vmatprep.subr.bf16.mxu0 0
    %430 = vmatpush1.bf16.msra.mxu0 %v402
    %431 = vmatprep.subr.bf16.mxu0 0
    %432 = vmatpush1.bf16.msra.mxu0 %v401
    %433 = vmatprep.subr.bf16.mxu0 0
    %434 = vmatpush2.bf16.msra.mxu0 0
    %435 = vmatprep.subr.bf16.mxu0 0
    %436 = vmatpush2.bf16.msra.mxu0 0
    %437 = vmatprep.subr.bf16.mxu0 0
    %438 = vmatpush2.bf16.msra.mxu0 0
    %439 = vmatprep.subr.bf16.mxu0 0
    %440 = vmatpush2.bf16.msra.mxu0 0
    %441 = vmatprep.subr.bf16.mxu0 0
    %442 = vmatpush2.bf16.msra.mxu0 0
    %443 = vmatprep.subr.bf16.mxu0 0
    %444 = vmatpush2.bf16.msra.mxu0 0
    %445 = vmatprep.subr.bf16.mxu0 0
    %446 = vmatpush2.bf16.msra.mxu0 0
    %447 = vmatprep.subr.bf16.mxu0 0
    %448 = vmatpush2.bf16.msra.mxu0 0
    %449 = vmatprep.mubr.bf16.mxu0 0
    %450 = vmatmul.mubr.bf16.gmra.mxu0 %v364
    %v451 = vpop.f32.mrf.mxu0
    %v452 = vadd.f32 %v368, %v451
    %v453 = vpop.f32.mrf.mxu0
    %v454 = vpop.f32.mrf.mxu0
    %v455 = vpop.f32.mrf.mxu0
    %456 = vdwg.mxu0
    %v457 = vld [vmem:[#allocation7 + $0x7] sm:$0x1]
    %v458 = vld [vmem:[#allocation7 + $0xb] sm:$0x1]
    %v459 = vrot.slane %v452, 4
    %v460 = vadd.f32 %v452, %v459
    %v461 = vrot.slane %v460, 2
    %v462 = vadd.f32 %v460, %v461
    %v463 = vrot.slane %v462, 1
    %v464 = vadd.f32 %v462, %v463
    %v465 = vmul.f32 %v464, %v174
    %v466 = vmul.f32 %v452, %v452
    %v467 = vrot.slane %v466, 4
    %v468 = vadd.f32 %v466, %v467
    %v469 = vrot.slane %v468, 2
    %v470 = vadd.f32 %v468, %v469
    %v471 = vrot.slane %v470, 1
    %v472 = vadd.f32 %v470, %v471
    %v473 = vmul.f32 %v472, %v174
    %v474 = vmul.f32 %v465, %v465
    %v475 = vsub.f32 %v473, %v474
    %v476 = vsub.f32 %v452, %v465
    %v477 = vadd.f32 %v475, 1e-05
    %v478 = vrsqrt.pop %v477
    %v479 = vmul.f32 %v476, %v478
    %v480 = vlaneseq
    %v481 = vshrl.u32 %v480, 7
    %v482 = vsub.s32 0, %v481
    %v483 = vrot.slane %v457, %v482
    %v484 = vmul.f32 %v479, %v483
    %v485 = vlaneseq
    %v486 = vshrl.u32 %v485, 7
    %v487 = vsub.s32 0, %v486
    %v488 = vrot.slane %v458, %v487
    %v489 = vadd.f32 %v484, %v488
    %v490 = vmax.f32 %v489, 0.0
    %s491 = scalar_lea.vmem [#allocation5], 192
    %v492 = vld [vmem:[%s491] sm:$0xf]
    %v493 = vld [vmem:[%s491 + $0x4] sm:$0xf]
    %v494 = vld [vmem:[%s491 + $0x8] sm:$0xf]
    %v495 = vld [vmem:[%s491 + $0xc] sm:$0xf]
    %v496 = vld [vmem:[%s491 + $0x10] sm:$0xf]
    %v497 = vld [vmem:[%s491 + $0x14] sm:$0xf]
    %v498 = vld [vmem:[%s491 + $0x18] sm:$0xf]
    %v499 = vld [vmem:[%s491 + $0x1c] sm:$0xf]
    %v500 = vld [vmem:[%s491 + $0x20] sm:$0xf]
    %v501 = vld [vmem:[%s491 + $0x24] sm:$0xf]
    %v502 = vld [vmem:[%s491 + $0x28] sm:$0xf]
    %v503 = vld [vmem:[%s491 + $0x2c] sm:$0xf]
    %v504 = vld [vmem:[%s491 + $0x30] sm:$0xf]
    %v505 = vld [vmem:[%s491 + $0x34] sm:$0xf]
    %v506 = vld [vmem:[%s491 + $0x38] sm:$0xf]
    %v507 = vld [vmem:[%s491 + $0x3c] sm:$0xf]
    %v508 = vld [vmem:[#allocation7 + $0x3] sm:$0x1]
    %v509 = vpack.c.bf16 %v490, %v490
    %v510 = vlaneseq
    %v511 = vshrl.u32 %v510, 7
    %v512 = vsub.s32 0, %v511
    %v513 = vrot.slane %v508, %v512
    %v530 = vunpack.c.l.b16 %v492
    %v531 = vunpack.c.l.b16 %v493
    %v532 = vunpack.c.l.b16 %v494
    %v533 = vunpack.c.l.b16 %v495
    %v534 = vunpack.c.l.b16 %v496
    %v535 = vunpack.c.l.b16 %v497
    %v536 = vunpack.c.l.b16 %v498
    %v537 = vunpack.c.l.b16 %v499
    %v538 = vunpack.c.l.b16 %v500
    %v539 = vunpack.c.l.b16 %v501
    %v540 = vunpack.c.l.b16 %v502
    %v541 = vunpack.c.l.b16 %v503
    %v542 = vunpack.c.l.b16 %v504
    %v543 = vunpack.c.l.b16 %v505
    %v544 = vunpack.c.l.b16 %v506
    %v545 = vunpack.c.l.b16 %v507
    %v546 = vpack.c.b16 %v531, %v530
    %v547 = vpack.c.b16 %v533, %v532
    %v548 = vpack.c.b16 %v535, %v534
    %v549 = vpack.c.b16 %v537, %v536
    %v550 = vpack.c.b16 %v539, %v538
    %v551 = vpack.c.b16 %v541, %v540
    %v552 = vpack.c.b16 %v543, %v542
    %v553 = vpack.c.b16 %v545, %v544
    %562 = vmatprep.subr.bf16.mxu0 0
    %563 = vmatpush1.bf16.msra.mxu0 %v553
    %564 = vmatprep.subr.bf16.mxu0 0
    %565 = vmatpush1.bf16.msra.mxu0 %v552
    %566 = vmatprep.subr.bf16.mxu0 0
    %567 = vmatpush1.bf16.msra.mxu0 %v551
    %568 = vmatprep.subr.bf16.mxu0 0
    %569 = vmatpush1.bf16.msra.mxu0 %v550
    %570 = vmatprep.subr.bf16.mxu0 0
    %571 = vmatpush1.bf16.msra.mxu0 %v549
    %572 = vmatprep.subr.bf16.mxu0 0
    %573 = vmatpush1.bf16.msra.mxu0 %v548
    %574 = vmatprep.subr.bf16.mxu0 0
    %575 = vmatpush1.bf16.msra.mxu0 %v547
    %576 = vmatprep.subr.bf16.mxu0 0
    %577 = vmatpush1.bf16.msra.mxu0 %v546
    %578 = vmatprep.subr.bf16.mxu0 0
    %579 = vmatpush2.bf16.msra.mxu0 0
    %580 = vmatprep.subr.bf16.mxu0 0
    %581 = vmatpush2.bf16.msra.mxu0 0
    %582 = vmatprep.subr.bf16.mxu0 0
    %583 = vmatpush2.bf16.msra.mxu0 0
    %584 = vmatprep.subr.bf16.mxu0 0
    %585 = vmatpush2.bf16.msra.mxu0 0
    %586 = vmatprep.subr.bf16.mxu0 0
    %587 = vmatpush2.bf16.msra.mxu0 0
    %588 = vmatprep.subr.bf16.mxu0 0
    %589 = vmatpush2.bf16.msra.mxu0 0
    %590 = vmatprep.subr.bf16.mxu0 0
    %591 = vmatpush2.bf16.msra.mxu0 0
    %592 = vmatprep.subr.bf16.mxu0 0
    %593 = vmatpush2.bf16.msra.mxu0 0
    %594 = vmatprep.mubr.bf16.mxu0 0
    %595 = vmatmul.mubr.bf16.gmra.mxu0 %v509
    %v596 = vpop.f32.mrf.mxu0
    %v597 = vadd.f32 %v513, %v596
    %v598 = vpop.f32.mrf.mxu0
    %v599 = vpop.f32.mrf.mxu0
    %v600 = vpop.f32.mrf.mxu0
    %601 = vdwg.mxu0
    %v602 = vld [vmem:[#allocation7 + $0x8] sm:$0x1]
    %v603 = vld [vmem:[#allocation7 + $0xc] sm:$0x1]
    %v604 = vrot.slane %v597, 4
    %v605 = vadd.f32 %v597, %v604
    %v606 = vrot.slane %v605, 2
    %v607 = vadd.f32 %v605, %v606
    %v608 = vrot.slane %v607, 1
    %v609 = vadd.f32 %v607, %v608
    %v610 = vmul.f32 %v609, %v174
    %v611 = vmul.f32 %v597, %v597
    %v612 = vrot.slane %v611, 4
    %v613 = vadd.f32 %v611, %v612
    %v614 = vrot.slane %v613, 2
    %v615 = vadd.f32 %v613, %v614
    %v616 = vrot.slane %v615, 1
    %v617 = vadd.f32 %v615, %v616
    %v618 = vmul.f32 %v617, %v174
    %v619 = vmul.f32 %v610, %v610
    %v620 = vsub.f32 %v618, %v619
    %v621 = vsub.f32 %v597, %v610
    %v622 = vadd.f32 %v620, 1e-05
    %v623 = vrsqrt.pop %v622
    %v624 = vmul.f32 %v621, %v623
    %v625 = vlaneseq
    %v626 = vshrl.u32 %v625, 7
    %v627 = vsub.s32 0, %v626
    %v628 = vrot.slane %v602, %v627
    %v629 = vmul.f32 %v624, %v628
    %v630 = vlaneseq
    %v631 = vshrl.u32 %v630, 7
    %v632 = vsub.s32 0, %v631
    %v633 = vrot.slane %v603, %v632
    %v634 = vadd.f32 %v629, %v633
    %v635 = vmax.f32 %v634, 0.0
    %s636 = scalar_lea.vmem [#allocation5], 256
    %v637 = vld [vmem:[%s636] sm:$0xf]
    %v638 = vld [vmem:[%s636 + $0x4] sm:$0xf]
    %v639 = vld [vmem:[%s636 + $0x8] sm:$0xf]
    %v640 = vld [vmem:[%s636 + $0xc] sm:$0xf]
    %v641 = vld [vmem:[%s636 + $0x10] sm:$0xf]
    %v642 = vld [vmem:[%s636 + $0x14] sm:$0xf]
    %v643 = vld [vmem:[%s636 + $0x18] sm:$0xf]
    %v644 = vld [vmem:[%s636 + $0x1c] sm:$0xf]
    %v645 = vld [vmem:[%s636 + $0x20] sm:$0xf]
    %v646 = vld [vmem:[%s636 + $0x24] sm:$0xf]
    %v647 = vld [vmem:[%s636 + $0x28] sm:$0xf]
    %v648 = vld [vmem:[%s636 + $0x2c] sm:$0xf]
    %v649 = vld [vmem:[%s636 + $0x30] sm:$0xf]
    %v650 = vld [vmem:[%s636 + $0x34] sm:$0xf]
    %v651 = vld [vmem:[%s636 + $0x38] sm:$0xf]
    %v652 = vld [vmem:[%s636 + $0x3c] sm:$0xf]
    %v653 = vld [vmem:[#allocation7 + $0x4] sm:$0x1]
    %v654 = vpack.c.bf16 %v635, %v635
    %v655 = vlaneseq
    %v656 = vshrl.u32 %v655, 7
    %v657 = vsub.s32 0, %v656
    %v658 = vrot.slane %v653, %v657
    %v675 = vunpack.c.l.b16 %v637
    %v676 = vunpack.c.l.b16 %v638
    %v677 = vunpack.c.l.b16 %v639
    %v678 = vunpack.c.l.b16 %v640
    %v679 = vunpack.c.l.b16 %v641
    %v680 = vunpack.c.l.b16 %v642
    %v681 = vunpack.c.l.b16 %v643
    %v682 = vunpack.c.l.b16 %v644
    %v683 = vunpack.c.l.b16 %v645
    %v684 = vunpack.c.l.b16 %v646
    %v685 = vunpack.c.l.b16 %v647
    %v686 = vunpack.c.l.b16 %v648
    %v687 = vunpack.c.l.b16 %v649
    %v688 = vunpack.c.l.b16 %v650
    %v689 = vunpack.c.l.b16 %v651
    %v690 = vunpack.c.l.b16 %v652
    %v691 = vpack.c.b16 %v676, %v675
    %v692 = vpack.c.b16 %v678, %v677
    %v693 = vpack.c.b16 %v680, %v679
    %v694 = vpack.c.b16 %v682, %v681
    %v695 = vpack.c.b16 %v684, %v683
    %v696 = vpack.c.b16 %v686, %v685
    %v697 = vpack.c.b16 %v688, %v687
    %v698 = vpack.c.b16 %v690, %v689
    %707 = vmatprep.subr.bf16.mxu0 0
    %708 = vmatpush1.bf16.msra.mxu0 %v698
    %709 = vmatprep.subr.bf16.mxu0 0
    %710 = vmatpush1.bf16.msra.mxu0 %v697
    %711 = vmatprep.subr.bf16.mxu0 0
    %712 = vmatpush1.bf16.msra.mxu0 %v696
    %713 = vmatprep.subr.bf16.mxu0 0
    %714 = vmatpush1.bf16.msra.mxu0 %v695
    %715 = vmatprep.subr.bf16.mxu0 0
    %716 = vmatpush1.bf16.msra.mxu0 %v694
    %717 = vmatprep.subr.bf16.mxu0 0
    %718 = vmatpush1.bf16.msra.mxu0 %v693
    %719 = vmatprep.subr.bf16.mxu0 0
    %720 = vmatpush1.bf16.msra.mxu0 %v692
    %721 = vmatprep.subr.bf16.mxu0 0
    %722 = vmatpush1.bf16.msra.mxu0 %v691
    %723 = vmatprep.subr.bf16.mxu0 0
    %724 = vmatpush2.bf16.msra.mxu0 0
    %725 = vmatprep.subr.bf16.mxu0 0
    %726 = vmatpush2.bf16.msra.mxu0 0
    %727 = vmatprep.subr.bf16.mxu0 0
    %728 = vmatpush2.bf16.msra.mxu0 0
    %729 = vmatprep.subr.bf16.mxu0 0
    %730 = vmatpush2.bf16.msra.mxu0 0
    %731 = vmatprep.subr.bf16.mxu0 0
    %732 = vmatpush2.bf16.msra.mxu0 0
    %733 = vmatprep.subr.bf16.mxu0 0
    %734 = vmatpush2.bf16.msra.mxu0 0
    %735 = vmatprep.subr.bf16.mxu0 0
    %736 = vmatpush2.bf16.msra.mxu0 0
    %737 = vmatprep.subr.bf16.mxu0 0
    %738 = vmatpush2.bf16.msra.mxu0 0
    %739 = vmatprep.mubr.bf16.mxu0 0
    %740 = vmatmul.mubr.bf16.gmra.mxu0 %v654
    %v741 = vpop.f32.mrf.mxu0
    %v742 = vadd.f32 %v658, %v741
    %v743 = vpop.f32.mrf.mxu0
    %v744 = vpop.f32.mrf.mxu0
    %v745 = vpop.f32.mrf.mxu0
    %746 = vdwg.mxu0
    %747 = vst [vmem:[#allocation8] sm:$0xff] %v742
    // Predicated region
    $region26: #{tpu_custom_call.1} parent=1 // pred_check
      _
    $region27: #{tpu_custom_call.1} parent=1 // pred_check_branch
      %749 = sbr.rel (0) target = $region29
    $region28: #{tpu_custom_call.1} parent=1 // pred_region
      %s751 = ssub.s32 128, 128
      %752 = vsyncadd [#allocation4], %s751
      %s754 = sshll.u32 [#allocation8], 4
      %s755 = int_to_ptr.vmem [resolvable:$true] %s754
      %757 = dma.vmem_to_hbm [thread:$0]  %s755, 128, %s3, [#allocation4]
    $region29: #{tpu_custom_call.1} parent=1 // pred_fallthru
      _
    // Predicated region
    $region30: #{tpu_custom_call.1} parent=1 // pred_check
      _
    $region31: #{tpu_custom_call.1} parent=1 // pred_check_branch
      %759 = sbr.rel (0) target = $region33
    $region32: #{tpu_custom_call.1} parent=1 // pred_region
      %760 = dma.done [#allocation4], 128
    $region33: #{tpu_custom_call.1} parent=1 // pred_fallthru
      _
    %761 = vsyncpa [#allocation3], 1
    %762 = vsyncpa [#allocation6], 1
    %763 = vsyncpa [#allocation4], 1

</llo_original>
